<compile_context>
chip_gen: v6e
topology: v6e:2x2x1
jax: 0.10.0
libtpu: 0.0.40
codegen_flags: <defaults>
</compile_context>

<pallas_src>
import jax
import jax.numpy as jnp
from jax.experimental import pallas as pl
from jax.experimental.pallas import tpu as pltpu

_LANES = 128              # vreg lane width
_SUBLANES = 8             # f32 sublane count
_MIN_PALLAS_ELEMS = 2048  # below this, plain XLA beats any kernel launch
_MIN_ROWS_FOR_SPLIT = 64  # above this, force >= 2 grid steps (v7x megacore)


def _round_up(v, m):
    return ((v + m - 1) // m) * m


def _affine_kernel(w_ref, b_ref, x_ref, o_ref):
    # w_ref / b_ref: (1,) scalars in SMEM.  x_ref / o_ref: (tile_r, 128) VMEM.
    o_ref[...] = x_ref[...] * w_ref[0] + b_ref[0]   # VPU FMA, full-lane vld/vst


def _general_linear_kernel(x_ref, wt_ref, b_ref, o_ref):
    # x_ref: (tn, f_in), wt_ref: (f_in, f_out_p) pre-transposed in the wrapper,
    # b_ref: (1, f_out_p), o_ref: (tn, f_out_p) (f_out_p is a multiple of 128).
    o_ref[...] = (
        jnp.dot(x_ref[...], wt_ref[...], preferred_element_type=jnp.float32)
        + b_ref[...]
    ).astype(o_ref.dtype)


def linear_regression_forward(x, weight, bias, *, tile_rows=8192):
    """Pallas equivalent of LinearRegression.forward.

    x:      (N, in_features) float32
    weight: (out_features, in_features) float32
    bias:   (out_features,) float32
    returns: flattened (N * out_features,) float32
    """
    n, f_in = x.shape
    f_out = weight.shape[0]

    if f_in == 1 and f_out == 1:
        # ---------------- fast scalar-affine path: y = x * w + b ------------
        flat = x.reshape(-1)

        # Small-N bypass: launch + per-step overhead dominates; one fused XLA
        # elementwise op is strictly cheaper for the module's typical batches.
        if n < _MIN_PALLAS_ELEMS:
            return flat * weight[0, 0] + bias[0]

        rows_needed = pl.cdiv(n, _LANES)
        pad = rows_needed * _LANES - n
        if pad:
            flat = jnp.pad(flat, (0, pad))          # only when n % 128 != 0
        xs = flat.reshape(rows_needed, _LANES)      # lane-dense slab

        if rows_needed > _MIN_ROWS_FOR_SPLIT:
            # Guarantee >= 2 grid steps so the "parallel" axis can be sharded
            # across both TensorCores on v7x; keep tiles large (<= tile_rows).
            tile_r = min(tile_rows,
                         _round_up(pl.cdiv(rows_needed, 2), _SUBLANES))
            grid_rows = pl.cdiv(rows_needed, tile_r)  # ragged last block OK
        else:
            tile_r = rows_needed                      # single block == full dim
            grid_rows = 1

        tile_bytes = tile_r * _LANES * 4
        # 1 input + 1 output, double-buffered, plus headroom; capped well below
        # v7x physical VMEM (64 MiB).  Covers v5e's 16 MiB scoped default too.
        vmem_limit = min(max(4 * tile_bytes + (4 << 20), 16 << 20), 48 << 20)

        out = pl.pallas_call(
            _affine_kernel,
            out_shape=jax.ShapeDtypeStruct((rows_needed, _LANES), x.dtype),
            grid=(grid_rows,),
            in_specs=[
                pl.BlockSpec(memory_space=pltpu.MemorySpace.SMEM),   # weight
                pl.BlockSpec(memory_space=pltpu.MemorySpace.SMEM),   # bias
                pl.BlockSpec((tile_r, _LANES), lambda i: (i, 0)),    # x slab
            ],
            out_specs=pl.BlockSpec((tile_r, _LANES), lambda i: (i, 0)),
            compiler_params=pltpu.CompilerParams(
                dimension_semantics=("parallel",),
                vmem_limit_bytes=vmem_limit,
            ),
            cost_estimate=pl.CostEstimate(
                flops=2 * rows_needed * _LANES,
                transcendentals=0,
                bytes_accessed=2 * 4 * rows_needed * _LANES,  # padded slab r+w
            ),
        )(weight.reshape(-1), bias.reshape(-1), xs)

        flat_out = out.reshape(-1)
        return flat_out[:n] if pad else flat_out

    # ---------------- general nn.Linear fallback -----------------------------
    # Tiled over N ("parallel"); weight pre-transposed once in the wrapper;
    # out_features padded to a multiple of 128 for lane-dense output stores.
    f_out_p = _round_up(f_out, _LANES)
    wt = weight.T                                   # (f_in, f_out), no in-kernel .T
    bias_p = bias
    if f_out_p != f_out:
        wt = jnp.pad(wt, ((0, 0), (0, f_out_p - f_out)))
        bias_p = jnp.pad(bias, (0, f_out_p - f_out))
    bias2d = bias_p.reshape(1, f_out_p)

    tn = min(512, _round_up(n, _SUBLANES))
    if tn >= n:
        tn = n                                      # single block == full dim
    grid = (pl.cdiv(n, tn),)

    out = pl.pallas_call(
        _general_linear_kernel,
        out_shape=jax.ShapeDtypeStruct((n, f_out_p), x.dtype),
        grid=grid,
        in_specs=[
            pl.BlockSpec((tn, f_in), lambda i: (i, 0)),
            pl.BlockSpec((f_in, f_out_p), lambda i: (0, 0)),
            pl.BlockSpec((1, f_out_p), lambda i: (0, 0)),
        ],
        out_specs=pl.BlockSpec((tn, f_out_p), lambda i: (i, 0)),
        compiler_params=pltpu.CompilerParams(
            dimension_semantics=("parallel",),
        ),
    )(x, wt, bias2d)
    if f_out_p != f_out:
        out = out[:, :f_out]
    return out.reshape(-1)


if __name__ == "__main__":
    key = jax.random.PRNGKey(0)
    k_w, k_b, *k_xs = jax.random.split(key, 6)

    in_features, out_features = 1, 1

    # nn.Linear default init: U(-1/sqrt(in_features), 1/sqrt(in_features)).
    bound = 1.0 / (in_features ** 0.5)
    weight = jax.random.uniform(
        k_w, (out_features, in_features), jnp.float32, -bound, bound
    )
    bias = jax.random.uniform(
        k_b, (out_features,), jnp.float32, -bound, bound
    )

    def ref_fwd(xv):
        return (xv @ weight.T + bias).reshape(-1)

    # Batch sizes exercising: XLA small-N bypass (8, 1000), Pallas no-pad
    # single-block path (4096), and Pallas padded + ragged, >=2-grid-step
    # path (8229 -> 65 row-blocks, tile_r=40, grid=2).
    for k, batch in zip(k_xs, (8, 1000, 4096, 8229)):
        xb = jax.random.normal(k, (batch, in_features), jnp.float32)
        out = jax.block_until_ready(linear_regression_forward(xb, weight, bias))
        assert out.shape == (batch * out_features,)
        assert jnp.allclose(out, ref_fwd(xb), atol=1e-5, rtol=1e-5)

    print("KERNEL_OK")
</pallas_src>

<mosaic_0001>
module attributes {stable_mosaic.version = 11 : i64} {
  func.func @_affine_kernel(%arg0: i32, %arg1: memref<1xf32, #tpu.memory_space<smem>>, %arg2: memref<1xf32, #tpu.memory_space<smem>>, %arg3: memref<32x128xf32, #tpu.memory_space<vmem>>, %arg4: memref<32x128xf32, #tpu.memory_space<vmem>>) attributes {dimension_semantics = [#tpu.dimension_semantics<parallel>], iteration_bounds = array<i64: 1>, scalar_prefetch = 0 : i64, scratch_operands = 0 : i64, tpu.core_type = #tpu.core_type<tc>, window_params = [{transform_indices = @transform_0, window_bounds = array<i64: 1>}, {transform_indices = @transform_1, window_bounds = array<i64: 1>}, {transform_indices = @transform_2, window_bounds = array<i64: 32, 128>}, {transform_indices = @transform_3, window_bounds = array<i64: 32, 128>}]} {
    %c0 = arith.constant 0 : index
    %c0_0 = arith.constant 0 : index
    %0 = vector.load %arg3[%c0, %c0_0] : memref<32x128xf32, #tpu.memory_space<vmem>>, vector<32x128xf32>
    %c0_1 = arith.constant 0 : index
    %1 = memref.load %arg1[%c0_1] : memref<1xf32, #tpu.memory_space<smem>>
    %2 = vector.broadcast %1 : f32 to vector<32x128xf32>
    %3 = arith.mulf %0, %2 : vector<32x128xf32>
    %c0_2 = arith.constant 0 : index
    %4 = memref.load %arg2[%c0_2] : memref<1xf32, #tpu.memory_space<smem>>
    %5 = vector.broadcast %4 : f32 to vector<32x128xf32>
    %6 = arith.addf %3, %5 : vector<32x128xf32>
    %c0_3 = arith.constant 0 : index
    %c0_4 = arith.constant 0 : index
    %7 = vector.load %arg4[%c0_3, %c0_4] : memref<32x128xf32, #tpu.memory_space<vmem>>, vector<32x128xf32>
    tpu.vector_store %arg4[%c0_3, %c0_4], %6 {strides = array<i32>} : memref<32x128xf32, #tpu.memory_space<vmem>>, vector<32x128xf32>,
    return
  }
  func.func @transform_0(%arg0: i32) -> i32 {
    %c0_i32 = arith.constant 0 : i32
    %c0_i32_0 = arith.constant 0 : i32
    return %c0_i32 : i32
  }
  func.func @transform_1(%arg0: i32) -> i32 {
    %c0_i32 = arith.constant 0 : i32
    %c0_i32_0 = arith.constant 0 : i32
    return %c0_i32 : i32
  }
  func.func @transform_2(%arg0: i32) -> (i32, i32) {
    %c0_i32 = arith.constant 0 : i32
    %c0_i32_0 = arith.constant 0 : i32
    return %arg0, %c0_i32 : i32, i32
  }
  func.func @transform_3(%arg0: i32) -> (i32, i32) {
    %c0_i32 = arith.constant 0 : i32
    %c0_i32_0 = arith.constant 0 : i32
    return %arg0, %c0_i32 : i32, i32
  }
}

</mosaic_0001>

<llo_original>
// kernel: tpu_custom_call.1
$region0: #{tpu_custom_call.1}
  #allocation0 [shape = 'u32[]', space=smem, size = 0x4, offset = 0x4, fixed_abs, tag = 'smem constant byte address 0x4 - core index']
  #allocation1 [shape = 'u32[144,128]{1,0:T(1,128)}', space=vmem, size = 0x12000, scoped, tag = 'internal scratch']
  #allocation2 [shape = 'f32[1]{0:T(128)S(6)}', space=smem, size = 0x200, scoped, tag = 'scoped memory for tpu_custom_call.1']
  #allocation3 [shape = 'f32[1]{0:T(128)S(6)}', space=smem, size = 0x200, scoped, tag = 'scoped memory for tpu_custom_call.1']
  %s0 = inlined_call_operand.<no memory space> [shape: f32[1], index: 0, kind: input, shape index: {}]
  %s1 = inlined_call_operand.<no memory space> [shape: f32[1], index: 1, kind: input, shape index: {}]
  %s2 = inlined_call_operand.hbm [shape: f32[32,128], index: 2, kind: input, shape index: {}]
  %s3 = inlined_call_operand.hbm [shape: f32[32,128], index: 3, kind: output, shape index: {}]
  %s4 = sld [smem:[#allocation0]]
  $region26: #{tpu_custom_call.1} parent=0
    _
  %s6 = ssub.s32 1, %s4
  %s7 = scalar_select 0, %s6, %s4
  %8 = sst [smem:[#allocation2]] %s0
  %9 = sst [smem:[#allocation3]] %s1
  $region1: #{tpu_custom_call.1} parent=0
    #allocation4 [shape = 'u8[16384]{0}', space=vmem, size = 0x4000, scoped, tag = 'input window, operand 2, single buffered']
    #allocation5 [shape = 's32[1]{0}', space=sflag, size = 0x4, scoped, tag = 'scoped memory for tpu_custom_call.1']
    #allocation6 [shape = 's32[1]{0}', space=sflag, size = 0x4, scoped, tag = 'scoped memory for tpu_custom_call.1']
    #allocation7 [shape = 'u8[16384]{0}', space=vmem, size = 0x4000, scoped, tag = 'output window, operand 0, single buffered']
    %10 = vsyncpa [#allocation5], 0
    %11 = vsyncpa [#allocation6], 0
    // Predicated region
    $region2: #{tpu_custom_call.1} parent=1 // pred_check
      _
    $region3: #{tpu_custom_call.1} parent=1 // pred_check_branch
      %13 = sbr.rel (0) target = $region5
    $region4: #{tpu_custom_call.1} parent=1 // pred_region
      _
    $region5: #{tpu_custom_call.1} parent=1 // pred_fallthru
      _
    // Predicated region
    $region6: #{tpu_custom_call.1} parent=1 // pred_check
      _
    $region7: #{tpu_custom_call.1} parent=1 // pred_check_branch
      %15 = sbr.rel (0) target = $region9
    $region8: #{tpu_custom_call.1} parent=1 // pred_region
      _
    $region9: #{tpu_custom_call.1} parent=1 // pred_fallthru
      _
    // Predicated region
    $region10: #{tpu_custom_call.1} parent=1 // pred_check
      _
    $region11: #{tpu_custom_call.1} parent=1 // pred_check_branch
      %17 = sbr.rel (0) target = $region13
    $region12: #{tpu_custom_call.1} parent=1 // pred_region
      %s19 = ssub.s32 512, 512
      %20 = vsyncadd [#allocation5], %s19
      %s21 = sshll.u32 [#allocation4], 4
      %s22 = int_to_ptr.vmem [resolvable:$true] %s21
      %27 = dma.hbm_to_vmem [thread:$0]  %s2, 512, %s22, [#allocation5], 128, 128, 8
    $region13: #{tpu_custom_call.1} parent=1 // pred_fallthru
      _
    // Predicated region
    $region14: #{tpu_custom_call.1} parent=1 // pred_check
      _
    $region15: #{tpu_custom_call.1} parent=1 // pred_check_branch
      %29 = sbr.rel (0) target = $region17
    $region16: #{tpu_custom_call.1} parent=1 // pred_region
      %30 = dma.done [#allocation5], 512
    $region17: #{tpu_custom_call.1} parent=1 // pred_fallthru
      _
    %v31 = vld [vmem:[#allocation4] sm:$0xff]
    %v32 = vld [vmem:[#allocation4 + $0x8] sm:$0xff]
    %v33 = vld [vmem:[#allocation4 + $0x10] sm:$0xff]
    %v34 = vld [vmem:[#allocation4 + $0x18] sm:$0xff]
    %s35 = sld [smem:[#allocation2]]
    %v36 = vstv %s35
    %v37 = vmul.f32 %v31, %v36
    %v38 = vmul.f32 %v32, %v36
    %v39 = vmul.f32 %v33, %v36
    %v40 = vmul.f32 %v34, %v36
    %s41 = sld [smem:[#allocation3]]
    %v42 = vstv %s41
    %v43 = vadd.f32 %v37, %v42
    %v44 = vadd.f32 %v38, %v42
    %v45 = vadd.f32 %v39, %v42
    %v46 = vadd.f32 %v40, %v42
    %47 = vst [vmem:[#allocation7] sm:$0xff] %v43
    %48 = vst [vmem:[#allocation7 + $0x8] sm:$0xff] %v44
    %49 = vst [vmem:[#allocation7 + $0x10] sm:$0xff] %v45
    %50 = vst [vmem:[#allocation7 + $0x18] sm:$0xff] %v46
    // Predicated region
    $region18: #{tpu_custom_call.1} parent=1 // pred_check
      _
    $region19: #{tpu_custom_call.1} parent=1 // pred_check_branch
      %52 = sbr.rel (0) target = $region21
    $region20: #{tpu_custom_call.1} parent=1 // pred_region
      %s54 = ssub.s32 512, 512
      %55 = vsyncadd [#allocation6], %s54
      %s56 = sshll.u32 [#allocation7], 4
      %s57 = int_to_ptr.vmem [resolvable:$true] %s56
      %62 = dma.vmem_to_hbm [thread:$0]  %s57, 512, %s3, [#allocation6], 128, 128, 8
    $region21: #{tpu_custom_call.1} parent=1 // pred_fallthru
      _
    // Predicated region
    $region22: #{tpu_custom_call.1} parent=1 // pred_check
      _
    $region23: #{tpu_custom_call.1} parent=1 // pred_check_branch
      %64 = sbr.rel (0) target = $region25
    $region24: #{tpu_custom_call.1} parent=1 // pred_region
      %65 = dma.done [#allocation6], 512
    $region25: #{tpu_custom_call.1} parent=1 // pred_fallthru
      _
    %66 = vsyncpa [#allocation5], 1
    %67 = vsyncpa [#allocation6], 1

</llo_original>
